<compile_context>
chip_gen: v7x
topology: tpu7x:2x2x1
jax: 0.10.0
libtpu: 0.0.40
codegen_flags: <defaults>
</compile_context>

<pallas_src>
import functools

import jax
import jax.numpy as jnp
from jax import lax
from jax.experimental import pallas as pl
from jax.experimental.pallas import tpu as pltpu


def _round_up(v, m):
    return (v + m - 1) // m * m


def _latent_encoder_kernel(
    x_ref,    # (TB*N, x_dim)   input dtype (f32)
    y_ref,    # (TB*N, y_dim)   input dtype (f32)
    w1x_ref,  # (x_dim, S)      compute_dtype
    w1y_ref,  # (y_dim, S)      compute_dtype
    b1_ref,   # (1, S)          f32
    w2_ref,   # (S, S)          compute_dtype
    b2_ref,   # (1, S)          f32
    wh_ref,   # (S, Zp)         f32   fused+padded [W_mu | W_sigma | 0]
    bh_ref,   # (1, Zp)         f32
    out_ref,  # (1, TB, Zp)     f32   [mu | sigma | pad]
    *,
    tb: int,
    num_points: int,
    z_dim: int,
):
    cdt = w1x_ref.dtype

    # Linear1 on split weights (no concat(x, y) anywhere); inputs are cast in-kernel so
    # HBM streams them exactly once. f32 accumulation on the MXU.
    h1 = (
        jnp.dot(x_ref[...].astype(cdt), w1x_ref[...],
                preferred_element_type=jnp.float32)
        + jnp.dot(y_ref[...].astype(cdt), w1y_ref[...],
                  preferred_element_type=jnp.float32)
        + b1_ref[...]
    )
    h1 = jnp.maximum(h1, 0.0)

    # Linear2 (activation cast to the weight dtype so bf16 hits the MXU natively).
    h2 = jnp.dot(h1.astype(w2_ref.dtype), w2_ref[...],
                 preferred_element_type=jnp.float32) + b2_ref[...]

    # s_i = relu(encoder_input); per-batch mean as a sublane reduction over N
    # (no MXU work, no averaging matrix).
    s_i = jnp.maximum(h2, 0.0)                                   # (TB*N, S) f32
    s = jnp.sum(s_i.reshape(tb, num_points, s_i.shape[-1]), axis=1) * jnp.float32(
        1.0 / num_points)                                        # (TB, S) f32

    # Fused heads into one lane-dense (TB, Zp) block; the sigma half is transformed
    # in-lane with an iota mask. Padded lanes are discarded by the wrapper.
    head = jnp.dot(s, wh_ref[...], preferred_element_type=jnp.float32) + bh_ref[...]
    col = lax.broadcasted_iota(jnp.int32, head.shape, 1)
    out_ref[0] = jnp.where(col < z_dim, head, 0.1 + 0.9 * jax.nn.sigmoid(head))


def _choose_tb(batch, num_points, target_rows=1024):
    """Batch elements per grid step.

    Constraints: TB | batch, and (TB * N) % 8 == 0 or TB == batch (BlockSpec sublane
    rule). Preference order: >= 2 grid steps (so v7x can shard across both
    TensorCores), then the largest TB with TB*N <= target_rows.
    """
    cands = [d for d in range(1, batch + 1)
             if batch % d == 0 and ((d * num_points) % 8 == 0 or d == batch)]
    for need_multi in (True, False):
        fits = [d for d in cands
                if d * num_points <= target_rows and (batch // d >= 2 or not need_multi)]
        if fits:
            return max(fits)
    return min(cands)   # nothing fits under target_rows: smallest legal tile


def latent_encoder_forward(x, y, params, *, compute_dtype=jnp.bfloat16,
                           target_rows=1024):
    """x: (B, N, x_dim), y: (B, N, y_dim). Returns (mu, sigma), each (B, z_dim)."""
    B, N, x_dim = x.shape
    y_dim = y.shape[-1]
    s_dim = params["w1"].shape[1]
    z_dim = params["wmu"].shape[1]
    zp = _round_up(2 * z_dim, 128)          # lane-dense fused-head width

    TB = _choose_tb(B, N, target_rows)      # batch elements per grid step
    R = TB * N                              # rows per grid step
    G = B // TB                             # grid steps

    # Split W1 so no concat(x, y) ever touches HBM. Only the (small) weights are cast
    # wrapper-side; the large inputs stay f32 in HBM and are cast inside the kernel.
    w1x = params["w1"][:x_dim].astype(compute_dtype)
    w1y = params["w1"][x_dim:].astype(compute_dtype)
    w2 = params["w2"].astype(compute_dtype)
    b1, b2 = params["b1"], params["b2"]

    # Fused + lane-padded heads: [W_mu | W_sigma | 0] -> (S, Zp); same for the bias.
    wh = jnp.zeros((s_dim, zp), jnp.float32)
    wh = wh.at[:, :z_dim].set(params["wmu"]).at[:, z_dim:2 * z_dim].set(params["wsg"])
    bh = jnp.zeros((1, zp), jnp.float32)
    bh = bh.at[:, :z_dim].set(params["bmu"]).at[:, z_dim:2 * z_dim].set(params["bsg"])

    # Flatten (B, N, d) -> (B*N, d): layout-free collapse of leading dims, no cast.
    x2 = x.reshape(B * N, x_dim)
    y2 = y.reshape(B * N, y_dim)

    def invariant(shape):
        # Grid-invariant block: same tile every step; single-buffer it to save VMEM.
        return pl.BlockSpec(shape, lambda i, _n=len(shape): (0,) * _n,
                            pipeline_mode=pl.Buffered(1))

    grid_spec = pltpu.PrefetchScalarGridSpec(
        num_scalar_prefetch=0,
        grid=(G,),
        in_specs=[
            pl.BlockSpec((R, x_dim), lambda i: (i, 0)),
            pl.BlockSpec((R, y_dim), lambda i: (i, 0)),
            invariant((x_dim, s_dim)), invariant((y_dim, s_dim)),
            invariant((1, s_dim)),
            invariant((s_dim, s_dim)), invariant((1, s_dim)),
            invariant((s_dim, zp)), invariant((1, zp)),
        ],
        out_specs=pl.BlockSpec((1, TB, zp), lambda i: (i, 0, 0)),
    )

    def nbytes(a):
        return a.size * jnp.dtype(a.dtype).itemsize

    cost = pl.CostEstimate(
        flops=2 * B * N * s_dim * (x_dim + y_dim)     # layer 1
        + 2 * B * N * s_dim * s_dim                   # layer 2
        + B * N * s_dim                               # mean-reduction adds
        + 2 * B * s_dim * zp,                         # fused heads (as executed, padded)
        transcendentals=B * zp,                       # sigmoid over the padded head
        bytes_accessed=nbytes(x2) + nbytes(y2) + nbytes(w1x) + nbytes(w1y)
        + nbytes(w2) + nbytes(b1) + nbytes(b2) + nbytes(wh) + nbytes(bh)
        + B * zp * 4,
    )

    # Rough VMEM footprint: double-buffered activations/output + single-buffered
    # weights + live f32 intermediates; clamp to [32 MiB, 64 MiB].
    in_item = jnp.dtype(x.dtype).itemsize
    w_item = jnp.dtype(compute_dtype).itemsize
    vmem_est = (
        2 * R * (x_dim + y_dim) * in_item
        + ((x_dim + y_dim) * s_dim + s_dim * s_dim) * w_item
        + (2 * s_dim + s_dim * zp + zp) * 4
        + 2 * TB * zp * 4
        + 3 * R * s_dim * 4
    )
    vmem_limit = int(min(64 * 1024 * 1024, max(32 * 1024 * 1024, 2 * vmem_est)))

    out = pl.pallas_call(
        functools.partial(_latent_encoder_kernel, tb=TB, num_points=N, z_dim=z_dim),
        out_shape=jax.ShapeDtypeStruct((G, TB, zp), jnp.float32),
        grid_spec=grid_spec,
        compiler_params=pltpu.CompilerParams(
            dimension_semantics=("parallel",),
            vmem_limit_bytes=vmem_limit),
        cost_estimate=cost,
    )(x2, y2, w1x, w1y, b1, w2, b2, wh, bh)

    out2 = out.reshape(B, zp)
    mu = out2[:, :z_dim]
    sigma = out2[:, z_dim:2 * z_dim]
    return mu, sigma


def init_params(key, x_dim, y_dim, s_dim, z_dim):
    """Deterministic PyTorch-Linear-style init (uniform in +/- 1/sqrt(fan_in))."""
    d_in = x_dim + y_dim

    def linear(k, fan_in, fan_out):
        kw, kb = jax.random.split(k)
        bound = 1.0 / jnp.sqrt(fan_in)
        w = jax.random.uniform(kw, (fan_in, fan_out), jnp.float32, -bound, bound)
        b = jax.random.uniform(kb, (1, fan_out), jnp.float32, -bound, bound)
        return w, b

    k1, k2, k3, k4 = jax.random.split(key, 4)
    w1, b1 = linear(k1, d_in, s_dim)
    w2, b2 = linear(k2, s_dim, s_dim)
    wmu, bmu = linear(k3, s_dim, z_dim)
    wsg, bsg = linear(k4, s_dim, z_dim)
    return dict(w1=w1, b1=b1, w2=w2, b2=b2,
                wmu=wmu, bmu=bmu, wsg=wsg, bsg=bsg)


def reference_forward(x, y, params):
    xy = jnp.concatenate([x, y], axis=-1)
    h1 = jnp.maximum(xy @ params["w1"] + params["b1"][0], 0.0)
    h2 = h1 @ params["w2"] + params["b2"][0]
    s = jnp.mean(jnp.maximum(h2, 0.0), axis=1)
    mu = s @ params["wmu"] + params["bmu"][0]
    sigma = 0.1 + 0.9 * jax.nn.sigmoid(s @ params["wsg"] + params["bsg"][0])
    return mu, sigma


if __name__ == "__main__":
    # Small shapes consistent with the module's forward.
    B, N = 2, 8
    x_dim, y_dim, s_dim, z_dim = 3, 2, 32, 16

    key = jax.random.PRNGKey(0)
    kx, ky, kp = jax.random.split(key, 3)
    x = jax.random.normal(kx, (B, N, x_dim), jnp.float32)
    y = jax.random.normal(ky, (B, N, y_dim), jnp.float32)
    params = init_params(kp, x_dim, y_dim, s_dim, z_dim)

    mu_ref, sigma_ref = reference_forward(x, y, params)

    # Exact-semantics check (f32 compute path).
    mu32, sg32 = latent_encoder_forward(x, y, params, compute_dtype=jnp.float32)
    jax.block_until_ready((mu32, sg32))
    assert jnp.allclose(mu32, mu_ref, atol=1e-5, rtol=1e-5)
    assert jnp.allclose(sg32, sigma_ref, atol=1e-5, rtol=1e-5)

    # Performance path: bf16 matmuls with f32 accumulation.
    mu16, sg16 = latent_encoder_forward(x, y, params, compute_dtype=jnp.bfloat16)
    jax.block_until_ready((mu16, sg16))
    assert jnp.allclose(mu16, mu_ref, atol=5e-2, rtol=5e-2)
    assert jnp.allclose(sg16, sigma_ref, atol=5e-2, rtol=5e-2)

    print("KERNEL_OK")
</pallas_src>

<mosaic_0001>
module attributes {stable_mosaic.version = 11 : i64} {
  func.func @_latent_encoder_kernel(%arg0: i32, %arg1: memref<8x3xf32, #tpu.memory_space<vmem>>, %arg2: memref<8x2xf32, #tpu.memory_space<vmem>>, %arg3: memref<3x32xf32, #tpu.memory_space<vmem>>, %arg4: memref<2x32xf32, #tpu.memory_space<vmem>>, %arg5: memref<1x32xf32, #tpu.memory_space<vmem>>, %arg6: memref<32x32xf32, #tpu.memory_space<vmem>>, %arg7: memref<1x32xf32, #tpu.memory_space<vmem>>, %arg8: memref<32x128xf32, #tpu.memory_space<vmem>>, %arg9: memref<1x128xf32, #tpu.memory_space<vmem>>, %arg10: memref<1x1x128xf32, #tpu.memory_space<vmem>>) attributes {dimension_semantics = [#tpu.dimension_semantics<parallel>], iteration_bounds = array<i64: 2>, scalar_prefetch = 0 : i64, scratch_operands = 0 : i64, tpu.core_type = #tpu.core_type<tc>, window_params = [{transform_indices = @transform_0, window_bounds = array<i64: 8, 3>}, {transform_indices = @transform_1, window_bounds = array<i64: 8, 2>}, {pipeline_mode = #tpu.pipeline_mode<synchronous>, transform_indices = @transform_2, window_bounds = array<i64: 3, 32>}, {pipeline_mode = #tpu.pipeline_mode<synchronous>, transform_indices = @transform_3, window_bounds = array<i64: 2, 32>}, {pipeline_mode = #tpu.pipeline_mode<synchronous>, transform_indices = @transform_4, window_bounds = array<i64: 1, 32>}, {pipeline_mode = #tpu.pipeline_mode<synchronous>, transform_indices = @transform_5, window_bounds = array<i64: 32, 32>}, {pipeline_mode = #tpu.pipeline_mode<synchronous>, transform_indices = @transform_6, window_bounds = array<i64: 1, 32>}, {pipeline_mode = #tpu.pipeline_mode<synchronous>, transform_indices = @transform_7, window_bounds = array<i64: 32, 128>}, {pipeline_mode = #tpu.pipeline_mode<synchronous>, transform_indices = @transform_8, window_bounds = array<i64: 1, 128>}, {transform_indices = @transform_9, window_bounds = array<i64: 1, 1, 128>}]} {
    %c0 = arith.constant 0 : index
    %c0_0 = arith.constant 0 : index
    %0 = vector.load %arg1[%c0, %c0_0] : memref<8x3xf32, #tpu.memory_space<vmem>>, vector<8x3xf32>
    %c0_1 = arith.constant 0 : index
    %c0_2 = arith.constant 0 : index
    %1 = vector.load %arg3[%c0_1, %c0_2] : memref<3x32xf32, #tpu.memory_space<vmem>>, vector<3x32xf32>
    %cst = arith.constant dense<0.000000e+00> : vector<8x32xf32>
    %2 = tpu.matmul %0, %1, %cst {dimension_numbers = #tpu.dot_dimension_numbers<[1], [0], [0], [1], [0, 0, 1, 1], [], []>} : vector<8x3xf32>, vector<3x32xf32>, vector<8x32xf32> -> vector<8x32xf32>
    %c0_3 = arith.constant 0 : index
    %c0_4 = arith.constant 0 : index
    %3 = vector.load %arg2[%c0_3, %c0_4] : memref<8x2xf32, #tpu.memory_space<vmem>>, vector<8x2xf32>
    %c0_5 = arith.constant 0 : index
    %c0_6 = arith.constant 0 : index
    %4 = vector.load %arg4[%c0_5, %c0_6] : memref<2x32xf32, #tpu.memory_space<vmem>>, vector<2x32xf32>
    %cst_7 = arith.constant dense<0.000000e+00> : vector<8x32xf32>
    %5 = tpu.matmul %3, %4, %cst_7 {dimension_numbers = #tpu.dot_dimension_numbers<[1], [0], [0], [1], [0, 0, 1, 1], [], []>} : vector<8x2xf32>, vector<2x32xf32>, vector<8x32xf32> -> vector<8x32xf32>
    %6 = arith.addf %2, %5 : vector<8x32xf32>
    %c0_8 = arith.constant 0 : index
    %c0_9 = arith.constant 0 : index
    %7 = vector.load %arg5[%c0_8, %c0_9] : memref<1x32xf32, #tpu.memory_space<vmem>>, vector<1x32xf32>
    %8 = vector.broadcast %7 : vector<1x32xf32> to vector<8x32xf32>
    %9 = arith.addf %6, %8 : vector<8x32xf32>
    %cst_10 = arith.constant 0.000000e+00 : f32
    %10 = vector.broadcast %cst_10 : f32 to vector<8x32xf32>
    %11 = arith.maximumf %9, %10 : vector<8x32xf32>
    %c0_11 = arith.constant 0 : index
    %c0_12 = arith.constant 0 : index
    %12 = vector.load %arg6[%c0_11, %c0_12] : memref<32x32xf32, #tpu.memory_space<vmem>>, vector<32x32xf32>
    %cst_13 = arith.constant dense<0.000000e+00> : vector<8x32xf32>
    %13 = tpu.matmul %11, %12, %cst_13 {dimension_numbers = #tpu.dot_dimension_numbers<[1], [0], [0], [1], [0, 0, 1, 1], [], []>} : vector<8x32xf32>, vector<32x32xf32>, vector<8x32xf32> -> vector<8x32xf32>
    %c0_14 = arith.constant 0 : index
    %c0_15 = arith.constant 0 : index
    %14 = vector.load %arg7[%c0_14, %c0_15] : memref<1x32xf32, #tpu.memory_space<vmem>>, vector<1x32xf32>
    %15 = vector.broadcast %14 : vector<1x32xf32> to vector<8x32xf32>
    %16 = arith.addf %13, %15 : vector<8x32xf32>
    %cst_16 = arith.constant 0.000000e+00 : f32
    %17 = vector.broadcast %cst_16 : f32 to vector<8x32xf32>
    %18 = arith.maximumf %16, %17 : vector<8x32xf32>
    %19 = vector.shape_cast %18 : vector<8x32xf32> to vector<1x8x32xf32>
    %cst_17 = arith.constant dense<0.000000e+00> : vector<1x32xf32>
    %20 = vector.multi_reduction <add>, %19, %cst_17 [1] : vector<1x8x32xf32> to vector<1x32xf32>
    %cst_18 = arith.constant 1.250000e-01 : f32
    %21 = vector.broadcast %cst_18 : f32 to vector<1x32xf32>
    %22 = arith.mulf %20, %21 : vector<1x32xf32>
    %c0_19 = arith.constant 0 : index
    %c0_20 = arith.constant 0 : index
    %23 = vector.load %arg8[%c0_19, %c0_20] : memref<32x128xf32, #tpu.memory_space<vmem>>, vector<32x128xf32>
    %cst_21 = arith.constant dense<0.000000e+00> : vector<1x128xf32>
    %24 = tpu.matmul %22, %23, %cst_21 {dimension_numbers = #tpu.dot_dimension_numbers<[1], [0], [0], [1], [0, 0, 1, 1], [], []>} : vector<1x32xf32>, vector<32x128xf32>, vector<1x128xf32> -> vector<1x128xf32>
    %c0_22 = arith.constant 0 : index
    %c0_23 = arith.constant 0 : index
    %25 = vector.load %arg9[%c0_22, %c0_23] : memref<1x128xf32, #tpu.memory_space<vmem>>, vector<1x128xf32>
    %26 = arith.addf %24, %25 : vector<1x128xf32>
    %27 = tpu.iota {dimensions = array<i32: 1>} : vector<1x128xi32>
    %c16_i32 = arith.constant 16 : i32
    %28 = vector.broadcast %c16_i32 : i32 to vector<1x128xi32>
    %29 = arith.cmpi slt, %27, %28 : vector<1x128xi32>
    %30 = arith.negf %26 : vector<1x128xf32>
    %31 = math.exp %30 : vector<1x128xf32>
    %cst_24 = arith.constant 1.000000e+00 : f32
    %32 = vector.broadcast %cst_24 : f32 to vector<1x128xf32>
    %33 = arith.addf %32, %31 : vector<1x128xf32>
    %34 = arith.divf %32, %33 : vector<1x128xf32>
    %cst_25 = arith.constant 0.899999976 : f32
    %35 = vector.broadcast %cst_25 : f32 to vector<1x128xf32>
    %36 = arith.mulf %35, %34 : vector<1x128xf32>
    %cst_26 = arith.constant 1.000000e-01 : f32
    %37 = vector.broadcast %cst_26 : f32 to vector<1x128xf32>
    %38 = arith.addf %37, %36 : vector<1x128xf32>
    %39 = arith.select %29, %26, %38 : vector<1x128xi1>, vector<1x128xf32>
    %c0_27 = arith.constant 0 : index
    %c0_28 = arith.constant 0 : index
    %c0_29 = arith.constant 0 : index
    %40 = vector.load %arg10[%c0_27, %c0_28, %c0_29] : memref<1x1x128xf32, #tpu.memory_space<vmem>>, vector<1x1x128xf32>
    %41 = vector.shape_cast %40 : vector<1x1x128xf32> to vector<1x128xf32>
    %42 = vector.shape_cast %39 : vector<1x128xf32> to vector<1x1x128xf32>
    tpu.vector_store %arg10[%c0_27, %c0_28, %c0_29], %42 {strides = array<i32>} : memref<1x1x128xf32, #tpu.memory_space<vmem>>, vector<1x1x128xf32>,
    return
  }
  func.func @transform_0(%arg0: i32) -> (i32, i32) {
    %c0_i32 = arith.constant 0 : i32
    %c0_i32_0 = arith.constant 0 : i32
    return %arg0, %c0_i32 : i32, i32
  }
  func.func @transform_1(%arg0: i32) -> (i32, i32) {
    %c0_i32 = arith.constant 0 : i32
    %c0_i32_0 = arith.constant 0 : i32
    return %arg0, %c0_i32 : i32, i32
  }
  func.func @transform_2(%arg0: i32) -> (i32, i32) {
    %c0_i32 = arith.constant 0 : i32
    %c0_i32_0 = arith.constant 0 : i32
    %c0_i32_1 = arith.constant 0 : i32
    return %c0_i32, %c0_i32_0 : i32, i32
  }
  func.func @transform_3(%arg0: i32) -> (i32, i32) {
    %c0_i32 = arith.constant 0 : i32
    %c0_i32_0 = arith.constant 0 : i32
    %c0_i32_1 = arith.constant 0 : i32
    return %c0_i32, %c0_i32_0 : i32, i32
  }
  func.func @transform_4(%arg0: i32) -> (i32, i32) {
    %c0_i32 = arith.constant 0 : i32
    %c0_i32_0 = arith.constant 0 : i32
    %c0_i32_1 = arith.constant 0 : i32
    return %c0_i32, %c0_i32_0 : i32, i32
  }
  func.func @transform_5(%arg0: i32) -> (i32, i32) {
    %c0_i32 = arith.constant 0 : i32
    %c0_i32_0 = arith.constant 0 : i32
    %c0_i32_1 = arith.constant 0 : i32
    return %c0_i32, %c0_i32_0 : i32, i32
  }
  func.func @transform_6(%arg0: i32) -> (i32, i32) {
    %c0_i32 = arith.constant 0 : i32
    %c0_i32_0 = arith.constant 0 : i32
    %c0_i32_1 = arith.constant 0 : i32
    return %c0_i32, %c0_i32_0 : i32, i32
  }
  func.func @transform_7(%arg0: i32) -> (i32, i32) {
    %c0_i32 = arith.constant 0 : i32
    %c0_i32_0 = arith.constant 0 : i32
    %c0_i32_1 = arith.constant 0 : i32
    return %c0_i32, %c0_i32_0 : i32, i32
  }
  func.func @transform_8(%arg0: i32) -> (i32, i32) {
    %c0_i32 = arith.constant 0 : i32
    %c0_i32_0 = arith.constant 0 : i32
    %c0_i32_1 = arith.constant 0 : i32
    return %c0_i32, %c0_i32_0 : i32, i32
  }
  func.func @transform_9(%arg0: i32) -> (i32, i32, i32) {
    %c0_i32 = arith.constant 0 : i32
    %c0_i32_0 = arith.constant 0 : i32
    %c0_i32_1 = arith.constant 0 : i32
    return %arg0, %c0_i32, %c0_i32_0 : i32, i32, i32
  }
}

</mosaic_0001>

<llo_original>
// kernel: tpu_custom_call.1
$region0: #{tpu_custom_call.1}
  #allocation0 [shape = 'u32[]', space=smem, size = 0x4, offset = 0x4, fixed_abs, tag = 'smem constant byte address 0x4 - core index']
  #allocation1 [shape = 'u32[144,128]{1,0:T(1,128)}', space=vmem, size = 0x12000, scoped, tag = 'internal scratch']
  %s0 = inlined_call_operand.vmem [shape: f32[16,3], index: 0, kind: input, shape index: {}]
  %s1 = inlined_call_operand.vmem [shape: f32[16,2], index: 1, kind: input, shape index: {}]
  %s2 = inlined_call_operand.hbm [shape: f32[3,32], index: 2, kind: input, shape index: {}]
  %s3 = inlined_call_operand.hbm [shape: f32[2,32], index: 3, kind: input, shape index: {}]
  %s4 = inlined_call_operand.hbm [shape: f32[1,32], index: 4, kind: input, shape index: {}]
  %s5 = inlined_call_operand.vmem [shape: f32[32,32], index: 5, kind: input, shape index: {}]
  %s6 = inlined_call_operand.hbm [shape: f32[1,32], index: 6, kind: input, shape index: {}]
  %s7 = inlined_call_operand.vmem [shape: f32[32,128], index: 7, kind: input, shape index: {}]
  %s8 = inlined_call_operand.vmem [shape: f32[1,128], index: 8, kind: input, shape index: {}]
  %s9 = inlined_call_operand.hbm [shape: f32[2,1,128], index: 9, kind: output, shape index: {}]
  %s10 = sld [smem:[#allocation0]]
  $region85: #{tpu_custom_call.1} parent=0
    _
  %s12 = ssub.s32 1, %s10
  %s13 = scalar_select 0, %s12, %s10
  $region1: #{tpu_custom_call.1} parent=0
    #allocation2 [shape = 'u8[2048]{0}', space=vmem, size = 0x800, scoped, tag = 'input window, operand 2, single buffered']
    #allocation3 [shape = 's32[2]{0}', space=sflag, size = 0x8, scoped, tag = 'scoped memory for tpu_custom_call.1']
    #allocation4 [shape = 's32[2]{0}', space=sflag, size = 0x8, scoped, tag = 'scoped memory for tpu_custom_call.1']
    #allocation5 [shape = 'u8[1024]{0}', space=vmem, size = 0x400, scoped, tag = 'input window, operand 3, single buffered']
    #allocation6 [shape = 's32[1]{0}', space=sflag, size = 0x4, scoped, tag = 'scoped memory for tpu_custom_call.1']
    #allocation7 [shape = 'u8[512]{0}', space=vmem, size = 0x400, scoped, tag = 'input window, operand 4, single buffered']
    #allocation8 [shape = 'u8[512]{0}', space=vmem, size = 0x400, scoped, tag = 'input window, operand 6, single buffered']
    #allocation9 [shape = 's32[1]{0}', space=sflag, size = 0x4, scoped, tag = 'scoped memory for tpu_custom_call.1']
    #allocation10 [shape = 'u8[1024]{0}', space=vmem, size = 0x400, scoped, tag = 'output window, operand 0']
    %14 = vsyncpa [#allocation3], 0
    %15 = vsyncpa [#allocation6], 0
    %16 = vsyncpa [#allocation9], 0
    %17 = vsyncpa [#allocation4], 0
    %s18 = scalar_lea.sflag [#allocation4], 1
    %19 = vsyncpa %s18, 0
    loop: start=0, step=1, limit=4
    $region2: #{tpu_custom_call.1} parent=1 // loop_pre_header
      _
    $region3: #{tpu_custom_call.1} parent=1 // loop_header
      %s21 = sphi 0, %s25
      %p22 = scmp.ge.s32.totalorder %s21, 4
      %s31 = sphi 0, %s33
      %s34 = sphi 0, %s31
      %s35 = sphi 0, %s34
      %s51 = sphi 0, %s35
      %s57 = sphi 0, %s59
      %s60 = sphi 0, %s57
      %s61 = sphi 0, %s60
      %s77 = sphi 0, %s61
      %s81 = sphi 0, %s81
      %s83 = sphi 0, %s81
      %s84 = sphi 0, %s83
      %s98 = sphi 0, %s84
      %s102 = sphi 0, %s102
      %s104 = sphi 0, %s102
      %s105 = sphi 0, %s104
      %s119 = sphi 0, %s105
      %s123 = sphi 0, %s123
      %s125 = sphi 0, %s123
      %s126 = sphi 0, %s125
      %s140 = sphi 0, %s126
      %s144 = sphi 0, %s144
      %s146 = sphi 0, %s144
      %s147 = sphi 0, %s146
      %s161 = sphi 0, %s147
      %s165 = sphi 0, %s165
      %s167 = sphi 0, %s165
      %s168 = sphi 0, %s167
      %s182 = sphi 0, %s168
      %s186 = sphi 0, %s186
      %s188 = sphi 0, %s186
      %s189 = sphi 0, %s188
      %s203 = sphi 0, %s189
      %s207 = sphi 0, %s207
      %s209 = sphi 0, %s207
      %s210 = sphi 0, %s209
      %s224 = sphi 0, %s210
      %s230 = sphi 0, %s232
      %s233 = sphi 0, %s230
      %s234 = sphi 0, %s233
      %s250 = sphi 0, %s234
    $region4: #{tpu_custom_call.1} parent=1 // loop_header_branch
      %24 = sbr.rel (%p22) target = $region8
    $region5: #{tpu_custom_call.1} parent=1 // loop_body
      %s26 = ssub.s32 %s21, 1
      %s27 = ssub.s32 %s21, 2
      %s28 = sadd.s32 %s21, 1
      %s29 = ssub.s32 %s21, %s28
      %p30 = scmp.eq.s32.totalorder %s29, 0
      %s32 = sadd.s32 %s31, 1
      %s33 = scalar_select %p30, %s31, %s32
      %p36 = pneg %p30
      %p37 = scmp.eq.s32.totalorder %s21, 1
      %p38 = por %p36, %p37
      %p39 = scmp.ne.s32.totalorder %s31, %s34
      %p40 = scmp.eq.s32.totalorder %s21, 0
      %p41 = por %p39, %p40
      %p42 = scmp.ne.s32.totalorder %s31, %s34
      %p43 = scmp.eq.s32.totalorder %s26, 1
      %p44 = por %p42, %p43
      %p45 = scmp.ne.s32.totalorder %s34, %s35
      %p46 = scmp.eq.s32.totalorder %s26, 0
      %p47 = por %p45, %p46
      %p48 = scmp.ne.s32.totalorder %s34, %s35
      %p49 = scmp.eq.s32.totalorder %s27, 1
      %p50 = por %p48, %p49
      %p52 = scmp.ne.s32.totalorder %s35, %s51
      %p53 = scmp.eq.s32.totalorder %s27, 0
      %p54 = por %p52, %p53
      %s55 = ssub.s32 %s21, %s28
      %p56 = scmp.eq.s32.totalorder %s55, 0
      %s58 = sadd.s32 %s57, 1
      %s59 = scalar_select %p56, %s57, %s58
      %p62 = pneg %p56
      %p63 = scmp.eq.s32.totalorder %s21, 1
      %p64 = por %p62, %p63
      %p65 = scmp.ne.s32.totalorder %s57, %s60
      %p66 = scmp.eq.s32.totalorder %s21, 0
      %p67 = por %p65, %p66
      %p68 = scmp.ne.s32.totalorder %s57, %s60
      %p69 = scmp.eq.s32.totalorder %s26, 1
      %p70 = por %p68, %p69
      %p71 = scmp.ne.s32.totalorder %s60, %s61
      %p72 = scmp.eq.s32.totalorder %s26, 0
      %p73 = por %p71, %p72
      %p74 = scmp.ne.s32.totalorder %s60, %s61
      %p75 = scmp.eq.s32.totalorder %s27, 1
      %p76 = por %p74, %p75
      %p78 = scmp.ne.s32.totalorder %s61, %s77
      %p79 = scmp.eq.s32.totalorder %s27, 0
      %p80 = por %p78, %p79
      %s82 = sadd.s32 %s81, 1
      %p85 = scmp.eq.s32.totalorder %s21, 1
      %p86 = scmp.ne.s32.totalorder %s81, %s83
      %p87 = scmp.eq.s32.totalorder %s21, 0
      %p88 = por %p86, %p87
      %p89 = scmp.ne.s32.totalorder %s81, %s83
      %p90 = scmp.eq.s32.totalorder %s26, 1
      %p91 = por %p89, %p90
      %p92 = scmp.ne.s32.totalorder %s83, %s84
      %p93 = scmp.eq.s32.totalorder %s26, 0
      %p94 = por %p92, %p93
      %p95 = scmp.ne.s32.totalorder %s83, %s84
      %p96 = scmp.eq.s32.totalorder %s27, 1
      %p97 = por %p95, %p96
      %p99 = scmp.ne.s32.totalorder %s84, %s98
      %p100 = scmp.eq.s32.totalorder %s27, 0
      %p101 = por %p99, %p100
      %s103 = sadd.s32 %s102, 1
      %p106 = scmp.eq.s32.totalorder %s21, 1
      %p107 = scmp.ne.s32.totalorder %s102, %s104
      %p108 = scmp.eq.s32.totalorder %s21, 0
      %p109 = por %p107, %p108
      %p110 = scmp.ne.s32.totalorder %s102, %s104
      %p111 = scmp.eq.s32.totalorder %s26, 1
      %p112 = por %p110, %p111
      %p113 = scmp.ne.s32.totalorder %s104, %s105
      %p114 = scmp.eq.s32.totalorder %s26, 0
      %p115 = por %p113, %p114
      %p116 = scmp.ne.s32.totalorder %s104, %s105
      %p117 = scmp.eq.s32.totalorder %s27, 1
      %p118 = por %p116, %p117
      %p120 = scmp.ne.s32.totalorder %s105, %s119
      %p121 = scmp.eq.s32.totalorder %s27, 0
      %p122 = por %p120, %p121
      %s124 = sadd.s32 %s123, 1
      %p127 = scmp.eq.s32.totalorder %s21, 1
      %p128 = scmp.ne.s32.totalorder %s123, %s125
      %p129 = scmp.eq.s32.totalorder %s21, 0
      %p130 = por %p128, %p129
      %p131 = scmp.ne.s32.totalorder %s123, %s125
      %p132 = scmp.eq.s32.totalorder %s26, 1
      %p133 = por %p131, %p132
      %p134 = scmp.ne.s32.totalorder %s125, %s126
      %p135 = scmp.eq.s32.totalorder %s26, 0
      %p136 = por %p134, %p135
      %p137 = scmp.ne.s32.totalorder %s125, %s126
      %p138 = scmp.eq.s32.totalorder %s27, 1
      %p139 = por %p137, %p138
      %p141 = scmp.ne.s32.totalorder %s126, %s140
      %p142 = scmp.eq.s32.totalorder %s27, 0
      %p143 = por %p141, %p142
      %s145 = sadd.s32 %s144, 1
      %p148 = scmp.eq.s32.totalorder %s21, 1
      %p149 = scmp.ne.s32.totalorder %s144, %s146
      %p150 = scmp.eq.s32.totalorder %s21, 0
      %p151 = por %p149, %p150
      %p152 = scmp.ne.s32.totalorder %s144, %s146
      %p153 = scmp.eq.s32.totalorder %s26, 1
      %p154 = por %p152, %p153
      %p155 = scmp.ne.s32.totalorder %s146, %s147
      %p156 = scmp.eq.s32.totalorder %s26, 0
      %p157 = por %p155, %p156
      %p158 = scmp.ne.s32.totalorder %s146, %s147
      %p159 = scmp.eq.s32.totalorder %s27, 1
      %p160 = por %p158, %p159
      %p162 = scmp.ne.s32.totalorder %s147, %s161
      %p163 = scmp.eq.s32.totalorder %s27, 0
      %p164 = por %p162, %p163
      %s166 = sadd.s32 %s165, 1
      %p169 = scmp.eq.s32.totalorder %s21, 1
      %p170 = scmp.ne.s32.totalorder %s165, %s167
      %p171 = scmp.eq.s32.totalorder %s21, 0
      %p172 = por %p170, %p171
      %p173 = scmp.ne.s32.totalorder %s165, %s167
      %p174 = scmp.eq.s32.totalorder %s26, 1
      %p175 = por %p173, %p174
      %p176 = scmp.ne.s32.totalorder %s167, %s168
      %p177 = scmp.eq.s32.totalorder %s26, 0
      %p178 = por %p176, %p177
      %p179 = scmp.ne.s32.totalorder %s167, %s168
      %p180 = scmp.eq.s32.totalorder %s27, 1
      %p181 = por %p179, %p180
      %p183 = scmp.ne.s32.totalorder %s168, %s182
      %p184 = scmp.eq.s32.totalorder %s27, 0
      %p185 = por %p183, %p184
      %s187 = sadd.s32 %s186, 1
      %p190 = scmp.eq.s32.totalorder %s21, 1
      %p191 = scmp.ne.s32.totalorder %s186, %s188
      %p192 = scmp.eq.s32.totalorder %s21, 0
      %p193 = por %p191, %p192
      %p194 = scmp.ne.s32.totalorder %s186, %s188
      %p195 = scmp.eq.s32.totalorder %s26, 1
      %p196 = por %p194, %p195
      %p197 = scmp.ne.s32.totalorder %s188, %s189
      %p198 = scmp.eq.s32.totalorder %s26, 0
      %p199 = por %p197, %p198
      %p200 = scmp.ne.s32.totalorder %s188, %s189
      %p201 = scmp.eq.s32.totalorder %s27, 1
      %p202 = por %p200, %p201
      %p204 = scmp.ne.s32.totalorder %s189, %s203
      %p205 = scmp.eq.s32.totalorder %s27, 0
      %p206 = por %p204, %p205
      %s208 = sadd.s32 %s207, 1
      %p211 = scmp.eq.s32.totalorder %s21, 1
      %p212 = scmp.ne.s32.totalorder %s207, %s209
      %p213 = scmp.eq.s32.totalorder %s21, 0
      %p214 = por %p212, %p213
      %p215 = scmp.ne.s32.totalorder %s207, %s209
      %p216 = scmp.eq.s32.totalorder %s26, 1
      %p217 = por %p215, %p216
      %p218 = scmp.ne.s32.totalorder %s209, %s210
      %p219 = scmp.eq.s32.totalorder %s26, 0
      %p220 = por %p218, %p219
      %p221 = scmp.ne.s32.totalorder %s209, %s210
      %p222 = scmp.eq.s32.totalorder %s27, 1
      %p223 = por %p221, %p222
      %p225 = scmp.ne.s32.totalorder %s210, %s224
      %p226 = scmp.eq.s32.totalorder %s27, 0
      %p227 = por %p225, %p226
      %s228 = ssub.s32 %s21, %s28
      %p229 = scmp.eq.s32.totalorder %s228, 0
      %s231 = sadd.s32 %s230, 1
      %s232 = scalar_select %p229, %s230, %s231
      %p235 = pneg %p229
      %p236 = scmp.eq.s32.totalorder %s21, 1
      %p237 = por %p235, %p236
      %p238 = scmp.ne.s32.totalorder %s230, %s233
      %p239 = scmp.eq.s32.totalorder %s21, 0
      %p240 = por %p238, %p239
      %p241 = scmp.ne.s32.totalorder %s230, %s233
      %p242 = scmp.eq.s32.totalorder %s26, 1
      %p243 = por %p241, %p242
      %p244 = scmp.ne.s32.totalorder %s233, %s234
      %p245 = scmp.eq.s32.totalorder %s26, 0
      %p246 = por %p244, %p245
      %p247 = scmp.ne.s32.totalorder %s233, %s234
      %p248 = scmp.eq.s32.totalorder %s27, 1
      %p249 = por %p247, %p248
      %p251 = scmp.ne.s32.totalorder %s234, %s250
      %p252 = scmp.eq.s32.totalorder %s27, 0
      %p253 = por %p251, %p252
      %p254 = scmp.le.s32.totalorder 1, %s21
      %p255 = scmp.lt.s32.totalorder %s21, 3
      %p256 = pnand %p254, %p255
      %p257 = pneg %p256
      // Predicated region
      $region9: #{tpu_custom_call.1} parent=5 // pred_check
        _
      $region10: #{tpu_custom_call.1} parent=5 // pred_check_branch
        %259 = sbr.rel (%p256) target = $region12
      $region11: #{tpu_custom_call.1} parent=5 // pred_region
        %s260 = ssub.s32 %s21, 1
        // Predicated region
        $region13: #{tpu_custom_call.1} parent=11 // pred_check
          %p261 = pneg %p94
        $region14: #{tpu_custom_call.1} parent=11 // pred_check_branch
          %263 = sbr.rel (%p261) target = $region16
        $region15: #{tpu_custom_call.1} parent=11 // pred_region
          %s265 = ssub.s32 64, 64
          %266 = vsyncadd [#allocation3], %s265
          %s268 = sshll.u32 [#allocation2], 4
          %s269 = int_to_ptr.vmem [resolvable:$true] %s268
          %271 = dma.hbm_to_vmem [thread:$0]  %s2, 64, %s269, [#allocation3]
        $region16: #{tpu_custom_call.1} parent=11 // pred_fallthru
          _
        // Predicated region
        $region17: #{tpu_custom_call.1} parent=11 // pred_check
          %p272 = pneg %p115
        $region18: #{tpu_custom_call.1} parent=11 // pred_check_branch
          %274 = sbr.rel (%p272) target = $region20
        $region19: #{tpu_custom_call.1} parent=11 // pred_region
          %s276 = ssub.s32 32, 32
          %277 = vsyncadd [#allocation6], %s276
          %s279 = sshll.u32 [#allocation5], 4
          %s280 = int_to_ptr.vmem [resolvable:$true] %s279
          %282 = dma.hbm_to_vmem [thread:$0]  %s3, 32, %s280, [#allocation6]
        $region20: #{tpu_custom_call.1} parent=11 // pred_fallthru
          _
        // Predicated region
        $region21: #{tpu_custom_call.1} parent=11 // pred_check
          %p283 = pneg %p136
        $region22: #{tpu_custom_call.1} parent=11 // pred_check_branch
          %285 = sbr.rel (%p283) target = $region24
        $region23: #{tpu_custom_call.1} parent=11 // pred_region
          %s287 = ssub.s32 16, 16
          %288 = vsyncadd [#allocation6], %s287
          %s290 = sshll.u32 [#allocation7], 4
          %s291 = int_to_ptr.vmem [resolvable:$true] %s290
          %293 = dma.hbm_to_vmem [thread:$0]  %s4, 16, %s291, [#allocation6]
        $region24: #{tpu_custom_call.1} parent=11 // pred_fallthru
          _
        // Predicated region
        $region25: #{tpu_custom_call.1} parent=11 // pred_check
          %p294 = pneg %p157
        $region26: #{tpu_custom_call.1} parent=11 // pred_check_branch
          %296 = sbr.rel (%p294) target = $region28
        $region27: #{tpu_custom_call.1} parent=11 // pred_region
          _
        $region28: #{tpu_custom_call.1} parent=11 // pred_fallthru
          _
        // Predicated region
        $region29: #{tpu_custom_call.1} parent=11 // pred_check
          %p297 = pneg %p178
        $region30: #{tpu_custom_call.1} parent=11 // pred_check_branch
          %299 = sbr.rel (%p297) target = $region32
        $region31: #{tpu_custom_call.1} parent=11 // pred_region
          %s301 = ssub.s32 16, 16
          %302 = vsyncadd [#allocation9], %s301
          %s304 = sshll.u32 [#allocation8], 4
          %s305 = int_to_ptr.vmem [resolvable:$true] %s304
          %307 = dma.hbm_to_vmem [thread:$0]  %s6, 16, %s305, [#allocation9]
        $region32: #{tpu_custom_call.1} parent=11 // pred_fallthru
          _
        // Predicated region
        $region33: #{tpu_custom_call.1} parent=11 // pred_check
          %p308 = pneg %p199
        $region34: #{tpu_custom_call.1} parent=11 // pred_check_branch
          %310 = sbr.rel (%p308) target = $region36
        $region35: #{tpu_custom_call.1} parent=11 // pred_region
          _
        $region36: #{tpu_custom_call.1} parent=11 // pred_fallthru
          _
        // Predicated region
        $region37: #{tpu_custom_call.1} parent=11 // pred_check
          %p311 = pneg %p220
        $region38: #{tpu_custom_call.1} parent=11 // pred_check_branch
          %313 = sbr.rel (%p311) target = $region40
        $region39: #{tpu_custom_call.1} parent=11 // pred_region
          _
        $region40: #{tpu_custom_call.1} parent=11 // pred_fallthru
          _
      $region12: #{tpu_custom_call.1} parent=5 // pred_fallthru
        _
      %p314 = scmp.lt.s32.totalorder %s21, 2
      // Predicated region
      $region41: #{tpu_custom_call.1} parent=5 // pred_check
        %p315 = pneg %p314
      $region42: #{tpu_custom_call.1} parent=5 // pred_check_branch
        %317 = sbr.rel (%p315) target = $region44
      $region43: #{tpu_custom_call.1} parent=5 // pred_region
        // Predicated region
        $region45: #{tpu_custom_call.1} parent=43 // pred_check
          %p318 = pneg %p41
        $region46: #{tpu_custom_call.1} parent=43 // pred_check_branch
          %320 = sbr.rel (%p318) target = $region48
        $region47: #{tpu_custom_call.1} parent=43 // pred_region
          %p321 = scmp.lt.s32.totalorder %s21, 1
          %s322 = scalar_select %p321, %s21, 1
          %s323 = smul.addr %s322, 8
          %s324 = scalar_lea.vmem %s0, %s323
        $region48: #{tpu_custom_call.1} parent=43 // pred_fallthru
          _
        // Predicated region
        $region49: #{tpu_custom_call.1} parent=43 // pred_check
          %p325 = pneg %p67
        $region50: #{tpu_custom_call.1} parent=43 // pred_check_branch
          %327 = sbr.rel (%p325) target = $region52
        $region51: #{tpu_custom_call.1} parent=43 // pred_region
          %p328 = scmp.lt.s32.totalorder %s21, 1
          %s329 = scalar_select %p328, %s21, 1
          %s330 = smul.addr %s329, 8
          %s331 = scalar_lea.vmem %s1, %s330
        $region52: #{tpu_custom_call.1} parent=43 // pred_fallthru
          _
      $region44: #{tpu_custom_call.1} parent=5 // pred_fallthru
        _
      %p332 = scmp.le.s32.totalorder 1, %s21
      %p333 = scmp.lt.s32.totalorder %s21, 3
      %p334 = pnand %p332, %p333
      %p335 = pneg %p334
      // Predicated region
      $region53: #{tpu_custom_call.1} parent=5 // pred_check
        _
      $region54: #{tpu_custom_call.1} parent=5 // pred_check_branch
        %337 = sbr.rel (%p334) target = $region56
      $region55: #{tpu_custom_call.1} parent=5 // pred_region
        %s338 = ssub.s32 %s21, 1
        // Predicated region
        $region57: #{tpu_custom_call.1} parent=55 // pred_check
          %p339 = pneg %p94
        $region58: #{tpu_custom_call.1} parent=55 // pred_check_branch
          %341 = sbr.rel (%p339) target = $region60
        $region59: #{tpu_custom_call.1} parent=55 // pred_region
          %342 = dma.done [#allocation3], 64
        $region60: #{tpu_custom_call.1} parent=55 // pred_fallthru
          _
        // Predicated region
        $region61: #{tpu_custom_call.1} parent=55 // pred_check
          %p343 = pneg %p115
        $region62: #{tpu_custom_call.1} parent=55 // pred_check_branch
          %345 = sbr.rel (%p343) target = $region64
        $region63: #{tpu_custom_call.1} parent=55 // pred_region
          %346 = dma.done [#allocation6], 32
        $region64: #{tpu_custom_call.1} parent=55 // pred_fallthru
          _
        // Predicated region
        $region65: #{tpu_custom_call.1} parent=55 // pred_check
          %p347 = pneg %p136
        $region66: #{tpu_custom_call.1} parent=55 // pred_check_branch
          %349 = sbr.rel (%p347) target = $region68
        $region67: #{tpu_custom_call.1} parent=55 // pred_region
          %350 = dma.done [#allocation6], 16
        $region68: #{tpu_custom_call.1} parent=55 // pred_fallthru
          _
        // Predicated region
        $region69: #{tpu_custom_call.1} parent=55 // pred_check
          %p351 = pneg %p178
        $region70: #{tpu_custom_call.1} parent=55 // pred_check_branch
          %353 = sbr.rel (%p351) target = $region72
        $region71: #{tpu_custom_call.1} parent=55 // pred_region
          %354 = dma.done [#allocation9], 16
        $region72: #{tpu_custom_call.1} parent=55 // pred_fallthru
          _
        %p355 = scmp.lt.s32.totalorder %s26, 1
        %s356 = scalar_select %p355, %s26, 1
        %s357 = smul.addr %s356, 8
        %s358 = scalar_lea.vmem %s0, %s357
        %p359 = pneg %p47
        %p360 = pneg %p44
        %p361 = scmp.lt.s32.totalorder %s26, 1
        %s362 = scalar_select %p361, %s26, 1
        %s363 = smul.addr %s362, 8
        %s364 = scalar_lea.vmem %s1, %s363
        %p365 = pneg %p73
        %p366 = pneg %p70
        %p367 = pneg %p94
        %p368 = pneg %p91
        %p369 = pneg %p115
        %p370 = pneg %p112
        %p371 = pneg %p136
        %p372 = pneg %p133
        %p373 = pneg %p157
        %p374 = pneg %p154
        %p375 = pneg %p178
        %p376 = pneg %p175
        %p377 = pneg %p199
        %p378 = pneg %p196
        %p379 = pneg %p220
        %p380 = pneg %p217
        %p381 = pneg %p246
        %p382 = pneg %p243
        %s383 = sand.u32 %s233, 1
        %s384 = scalar_lea.sflag [#allocation4], %s383
        %s385 = sand.u32 %s233, 1
        %s386 = scalar_lea.vmem [#allocation10], %s385
        %p387 = scmp.lt.s32.totalorder %s26, 1
        %s388 = scalar_select %p387, %s26, 1
        %s389 = smul.addr %s388, 8
        %s390 = scalar_lea.vmem %s0, %s389
        %p391 = scmp.lt.s32.totalorder %s26, 1
        %s392 = scalar_select %p391, %s26, 1
        %s393 = smul.addr %s392, 8
        %s394 = scalar_lea.vmem %s1, %s393
        %v395 = vld [vmem:[%s390] sm:$0xff]
        %v396 = vld [vmem:[#allocation2] sm:$0x7]
        %v397 = vld [vmem:[%s394] sm:$0xff]
        %v398 = vld [vmem:[#allocation5] sm:$0x3]
        %vm399 = vcmask 15360
        %v401 = vsel %vm399, %v397, 0
        %vm403 = vcmask 1041408
        %v405 = vsel %vm403, %v398, 0
        %407 = vmatprep.subr.mxu0 0.0
        %408 = vmatpush1.msra.mxu0 %v405
        %409 = vmatprep.subr.mxu0 0.0
        %410 = vmatpush1.msra.mxu0 0.0
        %411 = vmatprep.subr.mxu0 0.0
        %412 = vmatpush1.msra.mxu0 0.0
        %413 = vmatprep.subr.mxu0 0.0
        %414 = vmatpush1.msra.mxu0 0.0
        %415 = vmatprep.subr.mxu0 0.0
        %416 = vmatpush1.msra.mxu0 0.0
        %417 = vmatprep.subr.mxu0 0.0
        %418 = vmatpush1.msra.mxu0 0.0
        %419 = vmatprep.subr.mxu0 0.0
        %420 = vmatpush1.msra.mxu0 0.0
        %421 = vmatprep.subr.mxu0 0.0
        %422 = vmatpush1.msra.mxu0 0.0
        %423 = vmatprep.subr.mxu0 0.0
        %424 = vmatpush1.msra.mxu0 0.0
        %425 = vmatprep.subr.mxu0 0.0
        %426 = vmatpush1.msra.mxu0 0.0
        %427 = vmatprep.subr.mxu0 0.0
        %428 = vmatpush1.msra.mxu0 0.0
        %429 = vmatprep.subr.mxu0 0.0
        %430 = vmatpush1.msra.mxu0 0.0
        %431 = vmatprep.subr.mxu0 0.0
        %432 = vmatpush1.msra.mxu0 0.0
        %433 = vmatprep.subr.mxu0 0.0
        %434 = vmatpush1.msra.mxu0 0.0
        %435 = vmatprep.subr.mxu0 0.0
        %436 = vmatpush1.msra.mxu0 0.0
        %437 = vmatprep.subr.mxu0 0.0
        %438 = vmatpush1.msra.mxu0 0.0
        %439 = vmatprep.subr.mxu0 0.0
        %440 = vmatpush1.msra.mxu0 0.0
        %441 = vmatprep.subr.mxu0 0.0
        %442 = vmatpush1.msra.mxu0 0.0
        %443 = vmatprep.subr.mxu0 0.0
        %444 = vmatpush1.msra.mxu0 0.0
        %445 = vmatprep.subr.mxu0 0.0
        %446 = vmatpush1.msra.mxu0 0.0
        %447 = vmatprep.subr.mxu0 0.0
        %448 = vmatpush1.msra.mxu0 0.0
        %449 = vmatprep.subr.mxu0 0.0
        %450 = vmatpush1.msra.mxu0 0.0
        %451 = vmatprep.subr.mxu0 0.0
        %452 = vmatpush1.msra.mxu0 0.0
        %453 = vmatprep.subr.mxu0 0.0
        %454 = vmatpush1.msra.mxu0 0.0
        %455 = vmatprep.subr.mxu0 0.0
        %456 = vmatpush1.msra.mxu0 0.0
        %457 = vmatprep.subr.mxu0 0.0
        %458 = vmatpush1.msra.mxu0 0.0
        %459 = vmatprep.subr.mxu0 0.0
        %460 = vmatpush1.msra.mxu0 0.0
        %461 = vmatprep.subr.mxu0 0.0
        %462 = vmatpush1.msra.mxu0 0.0
        %463 = vmatprep.subr.mxu0 0.0
        %464 = vmatpush1.msra.mxu0 0.0
        %465 = vmatprep.subr.mxu0 0.0
        %466 = vmatpush1.msra.mxu0 0.0
        %467 = vmatprep.subr.mxu0 0.0
        %468 = vmatpush1.msra.mxu0 0.0
        %469 = vmatprep.subr.mxu0 0.0
        %470 = vmatpush1.msra.mxu0 0.0
        %471 = vmatprep.mubr.f32.mxu0 0.0
        %472 = vmatmul.mubr.f32.gmra.mrb[0].mxu0 %v401
        %v473 = vpop.f32.mrb[0].mxu0
        %v474 = vadd.f32 0.0, %v473
        %v475 = vpop.f32.mrb[0].mxu0
        %476 = vdwg.mxu0
        %vm477 = vcmask 23552
        %v479 = vsel %vm477, %v395, 0
        %vm481 = vcmask 1042432
        %v483 = vsel %vm481, %v396, 0
        %485 = vmatprep.subr.mxu0 0.0
        %486 = vmatpush1.msra.mxu0 %v483
        %487 = vmatprep.subr.mxu0 0.0
        %488 = vmatpush1.msra.mxu0 0.0
        %489 = vmatprep.subr.mxu0 0.0
        %490 = vmatpush1.msra.mxu0 0.0
        %491 = vmatprep.subr.mxu0 0.0
        %492 = vmatpush1.msra.mxu0 0.0
        %493 = vmatprep.subr.mxu0 0.0
        %494 = vmatpush1.msra.mxu0 0.0
        %495 = vmatprep.subr.mxu0 0.0
        %496 = vmatpush1.msra.mxu0 0.0
        %497 = vmatprep.subr.mxu0 0.0
        %498 = vmatpush1.msra.mxu0 0.0
        %499 = vmatprep.subr.mxu0 0.0
        %500 = vmatpush1.msra.mxu0 0.0
        %501 = vmatprep.subr.mxu0 0.0
        %502 = vmatpush1.msra.mxu0 0.0
        %503 = vmatprep.subr.mxu0 0.0
        %504 = vmatpush1.msra.mxu0 0.0
        %505 = vmatprep.subr.mxu0 0.0
        %506 = vmatpush1.msra.mxu0 0.0
        %507 = vmatprep.subr.mxu0 0.0
        %508 = vmatpush1.msra.mxu0 0.0
        %509 = vmatprep.subr.mxu0 0.0
        %510 = vmatpush1.msra.mxu0 0.0
        %511 = vmatprep.subr.mxu0 0.0
        %512 = vmatpush1.msra.mxu0 0.0
        %513 = vmatprep.subr.mxu0 0.0
        %514 = vmatpush1.msra.mxu0 0.0
        %515 = vmatprep.subr.mxu0 0.0
        %516 = vmatpush1.msra.mxu0 0.0
        %517 = vmatprep.subr.mxu0 0.0
        %518 = vmatpush1.msra.mxu0 0.0
        %519 = vmatprep.subr.mxu0 0.0
        %520 = vmatpush1.msra.mxu0 0.0
        %521 = vmatprep.subr.mxu0 0.0
        %522 = vmatpush1.msra.mxu0 0.0
        %523 = vmatprep.subr.mxu0 0.0
        %524 = vmatpush1.msra.mxu0 0.0
        %525 = vmatprep.subr.mxu0 0.0
        %526 = vmatpush1.msra.mxu0 0.0
        %527 = vmatprep.subr.mxu0 0.0
        %528 = vmatpush1.msra.mxu0 0.0
        %529 = vmatprep.subr.mxu0 0.0
        %530 = vmatpush1.msra.mxu0 0.0
        %531 = vmatprep.subr.mxu0 0.0
        %532 = vmatpush1.msra.mxu0 0.0
        %533 = vmatprep.subr.mxu0 0.0
        %534 = vmatpush1.msra.mxu0 0.0
        %535 = vmatprep.subr.mxu0 0.0
        %536 = vmatpush1.msra.mxu0 0.0
        %537 = vmatprep.subr.mxu0 0.0
        %538 = vmatpush1.msra.mxu0 0.0
        %539 = vmatprep.subr.mxu0 0.0
        %540 = vmatpush1.msra.mxu0 0.0
        %541 = vmatprep.subr.mxu0 0.0
        %542 = vmatpush1.msra.mxu0 0.0
        %543 = vmatprep.subr.mxu0 0.0
        %544 = vmatpush1.msra.mxu0 0.0
        %545 = vmatprep.subr.mxu0 0.0
        %546 = vmatpush1.msra.mxu0 0.0
        %547 = vmatprep.subr.mxu0 0.0
        %548 = vmatpush1.msra.mxu0 0.0
        %549 = vmatprep.mubr.f32.mxu0 0.0
        %550 = vmatmul.mubr.f32.gmra.mrb[0].mxu0 %v479
        %v551 = vpop.f32.mrb[0].mxu0
        %v552 = vadd.f32 %v474, %v551
        %v553 = vpop.f32.mrb[0].mxu0
        %554 = vdwg.mxu0
        %v555 = vld [vmem:[#allocation7] sm:$0x1]
        %v557 = vlaneseq
        %v558 = vshrl.u32 %v557, 7
        %v559 = vsub.s32 0, %v558
        %v560 = vrot.slane %v555, %v559
        %v562 = vadd.f32 %v552, %v560
        %v563 = vmax.f32 %v562, 0.0
        %v564 = vld [vmem:[%s5] sm:$0xff]
        %v565 = vld [vmem:[%s5 + $0x8] sm:$0xff]
        %v566 = vld [vmem:[%s5 + $0x10] sm:$0xff]
        %v567 = vld [vmem:[%s5 + $0x18] sm:$0xff]
        %v568 = vld [vmem:[#allocation8] sm:$0x1]
        %v570 = vlaneseq
        %v571 = vshrl.u32 %v570, 7
        %v572 = vsub.s32 0, %v571
        %v573 = vrot.slane %v568, %v572
        %vm575 = vcmask 261120
        %v577 = vsel %vm575, %v563, 0
        %579 = vmatprep.subr.mxu0 0.0
        %580 = vmatpush1.msra.mxu0 %v564
        %581 = vmatprep.subr.mxu0 0.0
        %582 = vmatpush1.msra.mxu0 %v565
        %583 = vmatprep.subr.mxu0 0.0
        %584 = vmatpush1.msra.mxu0 %v566
        %585 = vmatprep.subr.mxu0 0.0
        %586 = vmatpush1.msra.mxu0 %v567
        %587 = vmatprep.subr.mxu0 0.0
        %588 = vmatpush1.msra.mxu0 0.0
        %589 = vmatprep.subr.mxu0 0.0
        %590 = vmatpush1.msra.mxu0 0.0
        %591 = vmatprep.subr.mxu0 0.0
        %592 = vmatpush1.msra.mxu0 0.0
        %593 = vmatprep.subr.mxu0 0.0
        %594 = vmatpush1.msra.mxu0 0.0
        %595 = vmatprep.subr.mxu0 0.0
        %596 = vmatpush1.msra.mxu0 0.0
        %597 = vmatprep.subr.mxu0 0.0
        %598 = vmatpush1.msra.mxu0 0.0
        %599 = vmatprep.subr.mxu0 0.0
        %600 = vmatpush1.msra.mxu0 0.0
        %601 = vmatprep.subr.mxu0 0.0
        %602 = vmatpush1.msra.mxu0 0.0
        %603 = vmatprep.subr.mxu0 0.0
        %604 = vmatpush1.msra.mxu0 0.0
        %605 = vmatprep.subr.mxu0 0.0
        %606 = vmatpush1.msra.mxu0 0.0
        %607 = vmatprep.subr.mxu0 0.0
        %608 = vmatpush1.msra.mxu0 0.0
        %609 = vmatprep.subr.mxu0 0.0
        %610 = vmatpush1.msra.mxu0 0.0
        %611 = vmatprep.subr.mxu0 0.0
        %612 = vmatpush1.msra.mxu0 0.0
        %613 = vmatprep.subr.mxu0 0.0
        %614 = vmatpush1.msra.mxu0 0.0
        %615 = vmatprep.subr.mxu0 0.0
        %616 = vmatpush1.msra.mxu0 0.0
        %617 = vmatprep.subr.mxu0 0.0
        %618 = vmatpush1.msra.mxu0 0.0
        %619 = vmatprep.subr.mxu0 0.0
        %620 = vmatpush1.msra.mxu0 0.0
        %621 = vmatprep.subr.mxu0 0.0
        %622 = vmatpush1.msra.mxu0 0.0
        %623 = vmatprep.subr.mxu0 0.0
        %624 = vmatpush1.msra.mxu0 0.0
        %625 = vmatprep.subr.mxu0 0.0
        %626 = vmatpush1.msra.mxu0 0.0
        %627 = vmatprep.subr.mxu0 0.0
        %628 = vmatpush1.msra.mxu0 0.0
        %629 = vmatprep.subr.mxu0 0.0
        %630 = vmatpush1.msra.mxu0 0.0
        %631 = vmatprep.subr.mxu0 0.0
        %632 = vmatpush1.msra.mxu0 0.0
        %633 = vmatprep.subr.mxu0 0.0
        %634 = vmatpush1.msra.mxu0 0.0
        %635 = vmatprep.subr.mxu0 0.0
        %636 = vmatpush1.msra.mxu0 0.0
        %637 = vmatprep.subr.mxu0 0.0
        %638 = vmatpush1.msra.mxu0 0.0
        %639 = vmatprep.subr.mxu0 0.0
        %640 = vmatpush1.msra.mxu0 0.0
        %641 = vmatprep.subr.mxu0 0.0
        %642 = vmatpush1.msra.mxu0 0.0
        %643 = vmatprep.mubr.f32.mxu0 0.0
        %644 = vmatmul.mubr.f32.gmra.mrb[0].mxu0 %v577
        %v645 = vpop.f32.mrb[0].mxu0
        %v646 = vadd.f32 %v573, %v645
        %v647 = vpop.f32.mrb[0].mxu0
        %648 = vdwg.mxu0
        %v649 = vmax.f32 %v646, 0.0
        %v650 = vsel %vm575, %v649, 0.0
        %v651 = vrot.slane %v650, 4
        %v652 = vadd.f32 %v650, %v651
        %v653 = vrot.slane %v652, 2
        %v654 = vadd.f32 %v652, %v653
        %v655 = vrot.slane %v654, 1
        %v656 = vadd.f32 %v654, %v655
        %v657 = vmul.f32 %v656, 0.125
        %v658 = vld [vmem:[%s7] sm:$0xff]
        %v659 = vld [vmem:[%s7 + $0x8] sm:$0xff]
        %v660 = vld [vmem:[%s7 + $0x10] sm:$0xff]
        %v661 = vld [vmem:[%s7 + $0x18] sm:$0xff]
        %v662 = vld [vmem:[%s8] sm:$0x1]
        %v664 = vsel %vm575, %v657, 0
        %666 = vmatprep.subr.mxu0 0.0
        %667 = vmatpush1.msra.mxu0 %v658
        %668 = vmatprep.subr.mxu0 0.0
        %669 = vmatpush1.msra.mxu0 %v659
        %670 = vmatprep.subr.mxu0 0.0
        %671 = vmatpush1.msra.mxu0 %v660
        %672 = vmatprep.subr.mxu0 0.0
        %673 = vmatpush1.msra.mxu0 %v661
        %674 = vmatprep.subr.mxu0 0.0
        %675 = vmatpush1.msra.mxu0 0.0
        %676 = vmatprep.subr.mxu0 0.0
        %677 = vmatpush1.msra.mxu0 0.0
        %678 = vmatprep.subr.mxu0 0.0
        %679 = vmatpush1.msra.mxu0 0.0
        %680 = vmatprep.subr.mxu0 0.0
        %681 = vmatpush1.msra.mxu0 0.0
        %682 = vmatprep.subr.mxu0 0.0
        %683 = vmatpush1.msra.mxu0 0.0
        %684 = vmatprep.subr.mxu0 0.0
        %685 = vmatpush1.msra.mxu0 0.0
        %686 = vmatprep.subr.mxu0 0.0
        %687 = vmatpush1.msra.mxu0 0.0
        %688 = vmatprep.subr.mxu0 0.0
        %689 = vmatpush1.msra.mxu0 0.0
        %690 = vmatprep.subr.mxu0 0.0
        %691 = vmatpush1.msra.mxu0 0.0
        %692 = vmatprep.subr.mxu0 0.0
        %693 = vmatpush1.msra.mxu0 0.0
        %694 = vmatprep.subr.mxu0 0.0
        %695 = vmatpush1.msra.mxu0 0.0
        %696 = vmatprep.subr.mxu0 0.0
        %697 = vmatpush1.msra.mxu0 0.0
        %698 = vmatprep.subr.mxu0 0.0
        %699 = vmatpush1.msra.mxu0 0.0
        %700 = vmatprep.subr.mxu0 0.0
        %701 = vmatpush1.msra.mxu0 0.0
        %702 = vmatprep.subr.mxu0 0.0
        %703 = vmatpush1.msra.mxu0 0.0
        %704 = vmatprep.subr.mxu0 0.0
        %705 = vmatpush1.msra.mxu0 0.0
        %706 = vmatprep.subr.mxu0 0.0
        %707 = vmatpush1.msra.mxu0 0.0
        %708 = vmatprep.subr.mxu0 0.0
        %709 = vmatpush1.msra.mxu0 0.0
        %710 = vmatprep.subr.mxu0 0.0
        %711 = vmatpush1.msra.mxu0 0.0
        %712 = vmatprep.subr.mxu0 0.0
        %713 = vmatpush1.msra.mxu0 0.0
        %714 = vmatprep.subr.mxu0 0.0
        %715 = vmatpush1.msra.mxu0 0.0
        %716 = vmatprep.subr.mxu0 0.0
        %717 = vmatpush1.msra.mxu0 0.0
        %718 = vmatprep.subr.mxu0 0.0
        %719 = vmatpush1.msra.mxu0 0.0
        %720 = vmatprep.subr.mxu0 0.0
        %721 = vmatpush1.msra.mxu0 0.0
        %722 = vmatprep.subr.mxu0 0.0
        %723 = vmatpush1.msra.mxu0 0.0
        %724 = vmatprep.subr.mxu0 0.0
        %725 = vmatpush1.msra.mxu0 0.0
        %726 = vmatprep.subr.mxu0 0.0
        %727 = vmatpush1.msra.mxu0 0.0
        %728 = vmatprep.subr.mxu0 0.0
        %729 = vmatpush1.msra.mxu0 0.0
        %730 = vmatprep.mubr.f32.mxu0 0.0
        %731 = vmatmul.mubr.f32.gmra.mrb[0].mxu0 %v664
        %v732 = vpop.f32.mrb[0].mxu0
        %v733 = vadd.f32 %v662, %v732
        %v734 = vpop.f32.mrb[0].mxu0
        %735 = vdwg.mxu0
        %v736 = vlaneseq
        %v737 = vand.u32 %v736, 127
        %vm738 = vcmp.lt.s32.totalorder %v737, 16
        %v739 = vxor.u32 %v733, 2147483648
        %v740 = vmul.f32 %v739, 1.442695
        %v741 = vpow.pop %v740
        %v742 = vadd.f32 %v741, 1.0
        %v743 = vrcp.pop %v742
        %v744 = vmul.f32 1.0, %v743
        %v745 = vmul.f32 %v744, 0.9
        %v746 = vadd.f32 %v745, 0.1
        %v747 = vsel %vm738, %v733, %v746
        %748 = vst [vmem:[%s386] sm:$0x1] %v747
        %s749 = sand.u32 %s233, 1
        %s750 = scalar_lea.sflag [#allocation4], %s749
        %s751 = sand.u32 %s233, 1
        %s752 = scalar_lea.vmem [#allocation10], %s751
        // Predicated region
        $region73: #{tpu_custom_call.1} parent=55 // pred_check
          %p753 = pneg %p243
        $region74: #{tpu_custom_call.1} parent=55 // pred_check_branch
          %755 = sbr.rel (%p753) target = $region76
        $region75: #{tpu_custom_call.1} parent=55 // pred_region
          %s757 = ssub.s32 16, 16
          %758 = vsyncadd %s750, %s757
          %s759 = smul.addr %s26, 16
          %s760 = scalar_lea.hbm %s9, %s759
          %s762 = sshll.u32 %s752, 4
          %s763 = int_to_ptr.vmem [resolvable:$true] %s762
          %765 = dma.vmem_to_hbm [thread:$0]  %s763, 16, %s760, %s750
        $region76: #{tpu_custom_call.1} parent=55 // pred_fallthru
          _
      $region56: #{tpu_custom_call.1} parent=5 // pred_fallthru
        _
      %p766 = scmp.le.s32.totalorder 2, %s21
      // Predicated region
      $region77: #{tpu_custom_call.1} parent=5 // pred_check
        %p767 = pneg %p766
      $region78: #{tpu_custom_call.1} parent=5 // pred_check_branch
        %769 = sbr.rel (%p767) target = $region80
      $region79: #{tpu_custom_call.1} parent=5 // pred_region
        %s770 = ssub.s32 %s21, 2
        // Predicated region
        $region81: #{tpu_custom_call.1} parent=79 // pred_check
          %p771 = pneg %p249
        $region82: #{tpu_custom_call.1} parent=79 // pred_check_branch
          %773 = sbr.rel (%p771) target = $region84
        $region83: #{tpu_custom_call.1} parent=79 // pred_region
          %s774 = sand.u32 %s234, 1
          %s775 = scalar_lea.sflag [#allocation4], %s774
          %s776 = sand.u32 %s234, 1
          %s777 = scalar_lea.vmem [#allocation10], %s776
          %778 = dma.done %s775, 16
        $region84: #{tpu_custom_call.1} parent=79 // pred_fallthru
          _
      $region80: #{tpu_custom_call.1} parent=5 // pred_fallthru
        _
    $region6: #{tpu_custom_call.1} parent=1 // loop_footer
      %s25 = sadd.s32 1, %s21
    $region7: #{tpu_custom_call.1} parent=1 // loop_footer_branch
      %20 = sbr.rel target = $region3
    $region8: #{tpu_custom_call.1} parent=1 // loop_exit
      _
    %779 = vsyncpa [#allocation3], 1
    %s780 = scalar_lea.sflag [#allocation3], 1
    %781 = vsyncpa %s780, 1
    %782 = vsyncpa [#allocation6], 1
    %783 = vsyncpa [#allocation9], 1
    %784 = vsyncpa [#allocation4], 1
    %s785 = scalar_lea.sflag [#allocation4], 1
    %786 = vsyncpa %s785, 1

</llo_original>
